<compile_context>
chip_gen: v5e
topology: v5e:2x2
jax: 0.10.0
libtpu: 0.0.40
codegen_flags: <defaults>
</compile_context>

<pallas_src>
import numpy as np
from numpy import polynomial
import jax
import jax.numpy as jnp
from jax.experimental import pallas as pl
from jax.experimental.pallas import tpu as pltpu

# ---- model config (small, consistent with the module) -----------------------
IN_CH = 8
HID = 32
K = 4
FILTER_NUM = 2
N_NODES = 16
BATCH = 4


def get_bern_coeff(degree):
    # exact replica of BernConv.get_bern_coeff (K=4 hardcoded binomials)
    def Bernstein(de, i):
        aa = {0: 1, 1: 4, 2: 6, 3: 4, 4: 1}[i]
        coefficients = [0] * i + [aa]
        first_term = polynomial.polynomial.Polynomial(coefficients)
        second_term = polynomial.polynomial.Polynomial([1, -1]) ** (de - i)
        return (first_term * second_term).coef
    return [Bernstein(degree, i) for i in range(degree + 1)]


BERN_COEFF = get_bern_coeff(K)                      # (K+1) arrays of (K+1) floats
BERN_MAT = np.array(BERN_COEFF, dtype=np.float32)   # [k, i]


# ---- Pallas kernel -----------------------------------------------------------
def amnet_kernel(coeff_ref, x_ref, p_ref, w_ref, b_ref, out_ref):
    # coeff_ref: SMEM (FILTER_NUM*(K+1),) f32  folded sigmoid(bw) @ Bernstein matrix
    # x_ref:     VMEM (N, HID)  bf16          input features zero-padded to HID lanes
    # p_ref:     VMEM (N, N)    bf16          dense propagation matrix (L_sym / lambda_max)
    # w_ref:     VMEM (5, HID, HID) bf16      [w1_pad, w2, wf, wx, wt2]
    # b_ref:     VMEM (5, 1, HID)   f32       [b1, b2, bf, bx, bt2]
    # out_ref:   VMEM (N, HID)  f32
    f32 = jnp.float32
    bf16 = jnp.bfloat16
    n = x_ref.shape[0]

    w1 = w_ref[0]
    w2 = w_ref[1]
    wf = w_ref[2]
    wx = w_ref[3]
    wt2 = w_ref[4]
    b1 = b_ref[0]
    b2 = b_ref[1]
    bf_att = b_ref[2]
    bx_att = b_ref[3]
    bt2 = b_ref[4]

    # linear_transform_in: Linear -> ReLU -> Linear  (bf16 MXU operands, f32 accumulate)
    x = x_ref[...]
    h0 = jnp.maximum(jnp.dot(x, w1, preferred_element_type=f32) + b1, 0.0)      # f32
    z = jnp.dot(h0.astype(bf16), w2, preferred_element_type=f32) + b2           # f32

    # Bernstein propagation basis  Bx[i] = P^i z, P = L_sym / lambda_max.
    # Shortened critical path (depth 3 instead of 4):
    #   depth 1:  Pz = P z      |  P2 = P P      (independent)
    #   depth 2:  P2z = P2 z    |  P3z = P2 (Pz) (independent)
    #   depth 3:  P4z = P2 (P2z)
    P = p_ref[...]
    zb = z.astype(bf16)
    Pz = jnp.dot(P, zb, preferred_element_type=f32)
    P2 = jnp.dot(P, P, preferred_element_type=f32)
    P2b = P2.astype(bf16)
    P2z = jnp.dot(P2b, zb, preferred_element_type=f32)
    P3z = jnp.dot(P2b, Pz.astype(bf16), preferred_element_type=f32)
    P4z = jnp.dot(P2b, P2z.astype(bf16), preferred_element_type=f32)
    Bx = [z, Pz, P2z, P3z, P4z]                                                 # all f32

    # Folded BernConv filters: h_f = sum_i C[f, i] * Bx[i]  (f32 VPU FMAs, SMEM scalars)
    # (C already contains sigmoid(weight) and the Bernstein binomial coefficients;
    #  BernConv's unused `bias` parameter is intentionally omitted — never used in forward.)
    h_list = []
    for f in range(FILTER_NUM):
        acc = Bx[0] * coeff_ref[f * (K + 1) + 0]
        for i in range(1, K + 1):
            acc = acc + Bx[i] * coeff_ref[f * (K + 1) + i]
        h_list.append(acc)

    # attention over filters, projections batched into a single matmul:
    #   hp = tanh([h_0; h_1; ...] Wf + bf),  xp = tanh(z Wx + bx)
    H = jnp.concatenate(h_list, axis=0)                                          # [F*N, HID] f32
    hp = jnp.tanh(jnp.dot(H.astype(bf16), wf, preferred_element_type=f32) + bf_att)
    xp = jnp.tanh(jnp.dot(zb, wx, preferred_element_type=f32) + bx_att)          # [N, HID]

    # per-filter logits without materializing a repeated xp (static sublane slices)
    logits = [jnp.sum(hp[f * n:(f + 1) * n] * xp, axis=-1, keepdims=True)
              for f in range(FILTER_NUM)]                                        # F x [N, 1]

    # softmax over the filter axis (f32, EUP reciprocal)
    m = logits[0]
    for f in range(1, FILTER_NUM):
        m = jnp.maximum(m, logits[f])
    exps = [jnp.exp(l - m) for l in logits]
    denom = exps[0]
    for f in range(1, FILTER_NUM):
        denom = denom + exps[f]
    inv = pl.reciprocal(denom, approx=True)

    res = h_list[0] * (exps[0] * inv)
    for f in range(1, FILTER_NUM):
        res = res + h_list[f] * (exps[f] * inv)

    # output linear t2
    out_ref[...] = (jnp.dot(res.astype(bf16), wt2, preferred_element_type=f32)
                    + bt2).astype(out_ref.dtype)


# ---- parameter packing: done ONCE, outside the per-call path -----------------
def prepare_amnet_params(params):
    (w1, b1, w2, b2, bw, wf, bf, wx, bx, wt2, bt2) = params
    # Fold Bernstein coefficients with per-filter sigmoid weights:
    #   C[f, i] = sum_k sigmoid(bw[f,k]) B[k,i]   -> flattened 1-D for cheap SMEM storage
    C = (jax.nn.sigmoid(bw) @ jnp.asarray(BERN_MAT)).reshape(-1).astype(jnp.float32)
    # Pad w1 [IN_CH,HID] -> [HID,HID] with zero rows (exact same product against a
    # zero-column-padded x), then stack all weights / biases into one slab.
    w1p = jnp.zeros((HID, HID), jnp.float32).at[:IN_CH, :].set(w1)
    W_stack = jnp.stack([w1p, w2, wf, wx, wt2], axis=0).astype(jnp.bfloat16)  # (5, HID, HID)
    B_stack = jnp.stack([b1, b2, bf, bx, bt2], axis=0).astype(jnp.float32)    # (5, 1, HID)
    return C, W_stack, B_stack


@jax.jit
def amnet_pallas(x_batch, P_batch, packed):
    # x_batch: (B, N, IN_CH) f32,  P_batch: (B, N, N) f32
    C, W_stack, B_stack = packed
    bsz, n, _ = x_batch.shape

    # per-call data prep only: zero-column pad x to HID lanes and cast MXU operands to bf16
    x_pad = (jnp.zeros((bsz, n, HID), jnp.float32)
             .at[:, :, :IN_CH].set(x_batch).astype(jnp.bfloat16))
    P_bf = P_batch.astype(jnp.bfloat16)

    return pl.pallas_call(
        amnet_kernel,
        out_shape=jax.ShapeDtypeStruct((bsz, n, HID), jnp.float32),
        grid=(bsz,),
        in_specs=[
            pl.BlockSpec(memory_space=pltpu.MemorySpace.SMEM),      # folded coeffs (scalars)
            pl.BlockSpec((None, n, HID), lambda b: (b, 0, 0)),      # x (padded, bf16)
            pl.BlockSpec((None, n, n), lambda b: (b, 0, 0)),        # P (bf16)
            pl.BlockSpec((5, HID, HID), lambda b: (0, 0, 0)),       # packed weights (bf16)
            pl.BlockSpec((5, 1, HID), lambda b: (0, 0, 0)),         # packed biases (f32)
        ],
        out_specs=pl.BlockSpec((None, n, HID), lambda b: (b, 0, 0)),
        compiler_params=pltpu.CompilerParams(dimension_semantics=("parallel",)),
    )(C, x_pad, P_bf, W_stack, B_stack)


# ---- plain-JAX glue: dense propagation matrix from edge_index ---------------
# TODO(synk): the sparse PyG scatter-add `propagate` (+ get_laplacian) has no direct
# Pallas equivalent at this scale; it is materialized as a dense [N,N] propagation
# matrix outside the kernel.
def build_prop_matrix(edge_index, num_nodes, lambda_max=2.0):
    src, dst = edge_index
    mask = src != dst                          # remove_self_loops
    src, dst = src[mask], dst[mask]
    A = jnp.zeros((num_nodes, num_nodes), jnp.float32).at[dst, src].add(1.0)
    deg = A.sum(axis=1)
    dinv = jnp.where(deg > 0, 1.0 / jnp.sqrt(deg), 0.0)   # inf -> 0 masking
    L = jnp.eye(num_nodes, dtype=jnp.float32) - dinv[:, None] * A * dinv[None, :]
    return L / lambda_max                      # edge_weight / lambda_max (=2.0)


# ---- pure-JAX reference (mirrors the PyTorch forward exactly, f32) -----------
def amnet_ref(x, P, params):
    (w1, b1, w2, b2, bw, wf, bf, wx, bx, wt2, bt2) = params
    h0 = jax.nn.relu(x @ w1 + b1)
    z = h0 @ w2 + b2
    Bx = [z]
    cur = z
    for _ in range(K):
        cur = P @ cur
        Bx.append(cur)
    bws = jax.nn.sigmoid(bw)
    h_list = []
    for f in range(FILTER_NUM):
        out = jnp.zeros_like(z)
        for k in range(K + 1):
            coeff = BERN_COEFF[k]
            basis = Bx[0] * float(coeff[0])
            for i in range(1, K + 1):
                basis = basis + Bx[i] * float(coeff[i])
            out = out + basis * bws[f, k]
        h_list.append(out)
    h_filters = jnp.stack(h_list, axis=1)                 # [N, F, H]
    hproj = jnp.tanh(h_filters @ wf + bf)                 # [N, F, H]
    xproj = jnp.tanh(z @ wx + bx)[:, :, None]             # [N, H, 1]
    logit = hproj @ xproj                                 # [N, F, 1]
    score = jax.nn.softmax(logit, axis=1)
    res = jnp.sum(h_filters * score, axis=1)              # [N, H]
    return res @ wt2 + bt2


if __name__ == "__main__":
    key = jax.random.PRNGKey(0)
    ks = jax.random.split(key, 16)

    # deterministic parameters (shapes from AMNet.__init__ / BernConv.__init__)
    w1 = jax.random.normal(ks[0], (IN_CH, HID), jnp.float32) * 0.1
    b1 = jax.random.normal(ks[1], (1, HID), jnp.float32) * 0.1
    w2 = jax.random.normal(ks[2], (HID, HID), jnp.float32) * 0.1
    b2 = jax.random.normal(ks[3], (1, HID), jnp.float32) * 0.1
    bw = jax.random.normal(ks[4], (FILTER_NUM, K + 1), jnp.float32) * 0.5
    wf = jax.random.normal(ks[5], (HID, HID), jnp.float32) * 0.1
    bf = jax.random.normal(ks[6], (1, HID), jnp.float32) * 0.1
    wx = jax.random.normal(ks[7], (HID, HID), jnp.float32) * 0.1
    bx = jax.random.normal(ks[8], (1, HID), jnp.float32) * 0.1
    wt2 = jax.random.normal(ks[9], (HID, HID), jnp.float32) * 0.1
    bt2 = jax.random.normal(ks[10], (1, HID), jnp.float32) * 0.1
    params = (w1, b1, w2, b2, bw, wf, bf, wx, bx, wt2, bt2)

    # pack/fold parameters once (hoisted out of the per-call path)
    packed = prepare_amnet_params(params)

    # node features for a batch of graphs
    x = jax.random.normal(ks[11], (BATCH, N_NODES, IN_CH), jnp.float32)

    # deterministic small graphs: ring (both directions) + shifted chords per graph
    fwd = np.arange(N_NODES)
    ring_src = np.concatenate([fwd, (fwd + 1) % N_NODES])
    ring_dst = np.concatenate([(fwd + 1) % N_NODES, fwd])
    P_list = []
    for b in range(BATCH):
        cu = (np.array([0, 2, 5, 9]) + b) % N_NODES
        cv = (np.array([5, 9, 11, 14]) + b) % N_NODES
        src = np.concatenate([ring_src, cu, cv])
        dst = np.concatenate([ring_dst, cv, cu])
        ei = jnp.asarray(np.stack([src, dst]), jnp.int32)
        P_list.append(build_prop_matrix(ei, N_NODES))
    P_batch = jnp.stack(P_list, axis=0)

    out = jax.block_until_ready(amnet_pallas(x, P_batch, packed))

    ref = jnp.stack([amnet_ref(x[b], P_batch[b], params) for b in range(BATCH)], axis=0)
    ref = jax.block_until_ready(ref)

    assert out.shape == (BATCH, N_NODES, HID)
    # bf16 MXU operands (f32 accumulate / f32 elementwise) loosen accuracy slightly vs the
    # all-f32 reference; 2e-2 absolute bounds it comfortably at these magnitudes.
    err = float(jnp.max(jnp.abs(out - ref)))
    assert err < 2e-2, f"mismatch vs reference: max abs err = {err}"

    print("KERNEL_OK")
</pallas_src>

<mosaic_0001>
module attributes {stable_mosaic.version = 11 : i64} {
  func.func @amnet_kernel(%arg0: i32, %arg1: memref<10xf32, #tpu.memory_space<smem>>, %arg2: memref<1x16x32xbf16, #tpu.memory_space<vmem>>, %arg3: memref<1x16x16xbf16, #tpu.memory_space<vmem>>, %arg4: memref<5x32x32xbf16, #tpu.memory_space<vmem>>, %arg5: memref<5x1x32xf32, #tpu.memory_space<vmem>>, %arg6: memref<1x16x32xf32, #tpu.memory_space<vmem>>) attributes {dimension_semantics = [#tpu.dimension_semantics<parallel>], iteration_bounds = array<i64: 4>, scalar_prefetch = 0 : i64, scratch_operands = 0 : i64, tpu.core_type = #tpu.core_type<tc>, window_params = [{transform_indices = @transform_0, window_bounds = array<i64: 10>}, {transform_indices = @transform_1, window_bounds = array<i64: 1, 16, 32>}, {transform_indices = @transform_2, window_bounds = array<i64: 1, 16, 16>}, {pipeline_mode = #tpu.pipeline_mode<synchronous>, transform_indices = @transform_3, window_bounds = array<i64: 5, 32, 32>}, {pipeline_mode = #tpu.pipeline_mode<synchronous>, transform_indices = @transform_4, window_bounds = array<i64: 5, 1, 32>}, {transform_indices = @transform_5, window_bounds = array<i64: 1, 16, 32>}]} {
    %c0 = arith.constant 0 : index
    %c0_0 = arith.constant 0 : index
    %c0_1 = arith.constant 0 : index
    %0 = vector.load %arg4[%c0, %c0_0, %c0_1] : memref<5x32x32xbf16, #tpu.memory_space<vmem>>, vector<1x32x32xbf16>
    %1 = vector.shape_cast %0 : vector<1x32x32xbf16> to vector<32x32xbf16>
    %c1 = arith.constant 1 : index
    %c0_2 = arith.constant 0 : index
    %c0_3 = arith.constant 0 : index
    %2 = vector.load %arg4[%c1, %c0_2, %c0_3] : memref<5x32x32xbf16, #tpu.memory_space<vmem>>, vector<1x32x32xbf16>
    %3 = vector.shape_cast %2 : vector<1x32x32xbf16> to vector<32x32xbf16>
    %c2 = arith.constant 2 : index
    %c0_4 = arith.constant 0 : index
    %c0_5 = arith.constant 0 : index
    %4 = vector.load %arg4[%c2, %c0_4, %c0_5] : memref<5x32x32xbf16, #tpu.memory_space<vmem>>, vector<1x32x32xbf16>
    %5 = vector.shape_cast %4 : vector<1x32x32xbf16> to vector<32x32xbf16>
    %c3 = arith.constant 3 : index
    %c0_6 = arith.constant 0 : index
    %c0_7 = arith.constant 0 : index
    %6 = vector.load %arg4[%c3, %c0_6, %c0_7] : memref<5x32x32xbf16, #tpu.memory_space<vmem>>, vector<1x32x32xbf16>
    %7 = vector.shape_cast %6 : vector<1x32x32xbf16> to vector<32x32xbf16>
    %c4 = arith.constant 4 : index
    %c0_8 = arith.constant 0 : index
    %c0_9 = arith.constant 0 : index
    %8 = vector.load %arg4[%c4, %c0_8, %c0_9] : memref<5x32x32xbf16, #tpu.memory_space<vmem>>, vector<1x32x32xbf16>
    %9 = vector.shape_cast %8 : vector<1x32x32xbf16> to vector<32x32xbf16>
    %c0_10 = arith.constant 0 : index
    %c0_11 = arith.constant 0 : index
    %c0_12 = arith.constant 0 : index
    %10 = vector.load %arg5[%c0_10, %c0_11, %c0_12] : memref<5x1x32xf32, #tpu.memory_space<vmem>>, vector<1x1x32xf32>
    %11 = vector.shape_cast %10 : vector<1x1x32xf32> to vector<1x32xf32>
    %c1_13 = arith.constant 1 : index
    %c0_14 = arith.constant 0 : index
    %c0_15 = arith.constant 0 : index
    %12 = vector.load %arg5[%c1_13, %c0_14, %c0_15] : memref<5x1x32xf32, #tpu.memory_space<vmem>>, vector<1x1x32xf32>
    %13 = vector.shape_cast %12 : vector<1x1x32xf32> to vector<1x32xf32>
    %c2_16 = arith.constant 2 : index
    %c0_17 = arith.constant 0 : index
    %c0_18 = arith.constant 0 : index
    %14 = vector.load %arg5[%c2_16, %c0_17, %c0_18] : memref<5x1x32xf32, #tpu.memory_space<vmem>>, vector<1x1x32xf32>
    %15 = vector.shape_cast %14 : vector<1x1x32xf32> to vector<1x32xf32>
    %c3_19 = arith.constant 3 : index
    %c0_20 = arith.constant 0 : index
    %c0_21 = arith.constant 0 : index
    %16 = vector.load %arg5[%c3_19, %c0_20, %c0_21] : memref<5x1x32xf32, #tpu.memory_space<vmem>>, vector<1x1x32xf32>
    %17 = vector.shape_cast %16 : vector<1x1x32xf32> to vector<1x32xf32>
    %c4_22 = arith.constant 4 : index
    %c0_23 = arith.constant 0 : index
    %c0_24 = arith.constant 0 : index
    %18 = vector.load %arg5[%c4_22, %c0_23, %c0_24] : memref<5x1x32xf32, #tpu.memory_space<vmem>>, vector<1x1x32xf32>
    %19 = vector.shape_cast %18 : vector<1x1x32xf32> to vector<1x32xf32>
    %c0_25 = arith.constant 0 : index
    %c0_26 = arith.constant 0 : index
    %c0_27 = arith.constant 0 : index
    %20 = vector.load %arg2[%c0_25, %c0_26, %c0_27] : memref<1x16x32xbf16, #tpu.memory_space<vmem>>, vector<1x16x32xbf16>
    %21 = vector.shape_cast %20 : vector<1x16x32xbf16> to vector<16x32xbf16>
    %cst = arith.constant dense<0.000000e+00> : vector<16x32xf32>
    %22 = tpu.matmul %21, %1, %cst {dimension_numbers = #tpu.dot_dimension_numbers<[1], [0], [0], [1], [0, 0, 1, 1], [], []>} : vector<16x32xbf16>, vector<32x32xbf16>, vector<16x32xf32> -> vector<16x32xf32>
    %23 = vector.broadcast %11 : vector<1x32xf32> to vector<16x32xf32>
    %24 = arith.addf %22, %23 : vector<16x32xf32>
    %cst_28 = arith.constant 0.000000e+00 : f32
    %25 = vector.broadcast %cst_28 : f32 to vector<16x32xf32>
    %26 = arith.maximumf %24, %25 : vector<16x32xf32>
    %27 = arith.truncf %26 : vector<16x32xf32> to vector<16x32xbf16>
    %cst_29 = arith.constant dense<0.000000e+00> : vector<16x32xf32>
    %28 = tpu.matmul %27, %3, %cst_29 {dimension_numbers = #tpu.dot_dimension_numbers<[1], [0], [0], [1], [0, 0, 1, 1], [], []>} : vector<16x32xbf16>, vector<32x32xbf16>, vector<16x32xf32> -> vector<16x32xf32>
    %29 = vector.broadcast %13 : vector<1x32xf32> to vector<16x32xf32>
    %30 = arith.addf %28, %29 : vector<16x32xf32>
    %c0_30 = arith.constant 0 : index
    %c0_31 = arith.constant 0 : index
    %c0_32 = arith.constant 0 : index
    %31 = vector.load %arg3[%c0_30, %c0_31, %c0_32] : memref<1x16x16xbf16, #tpu.memory_space<vmem>>, vector<1x16x16xbf16>
    %32 = vector.shape_cast %31 : vector<1x16x16xbf16> to vector<16x16xbf16>
    %33 = arith.truncf %30 : vector<16x32xf32> to vector<16x32xbf16>
    %cst_33 = arith.constant dense<0.000000e+00> : vector<16x32xf32>
    %34 = tpu.matmul %32, %33, %cst_33 {dimension_numbers = #tpu.dot_dimension_numbers<[1], [0], [0], [1], [0, 0, 1, 1], [], []>} : vector<16x16xbf16>, vector<16x32xbf16>, vector<16x32xf32> -> vector<16x32xf32>
    %cst_34 = arith.constant dense<0.000000e+00> : vector<16x16xf32>
    %35 = tpu.matmul %32, %32, %cst_34 {dimension_numbers = #tpu.dot_dimension_numbers<[1], [0], [0], [1], [0, 0, 1, 1], [], []>} : vector<16x16xbf16>, vector<16x16xbf16>, vector<16x16xf32> -> vector<16x16xf32>
    %36 = arith.truncf %35 : vector<16x16xf32> to vector<16x16xbf16>
    %cst_35 = arith.constant dense<0.000000e+00> : vector<16x32xf32>
    %37 = tpu.matmul %36, %33, %cst_35 {dimension_numbers = #tpu.dot_dimension_numbers<[1], [0], [0], [1], [0, 0, 1, 1], [], []>} : vector<16x16xbf16>, vector<16x32xbf16>, vector<16x32xf32> -> vector<16x32xf32>
    %38 = arith.truncf %34 : vector<16x32xf32> to vector<16x32xbf16>
    %cst_36 = arith.constant dense<0.000000e+00> : vector<16x32xf32>
    %39 = tpu.matmul %36, %38, %cst_36 {dimension_numbers = #tpu.dot_dimension_numbers<[1], [0], [0], [1], [0, 0, 1, 1], [], []>} : vector<16x16xbf16>, vector<16x32xbf16>, vector<16x32xf32> -> vector<16x32xf32>
    %40 = arith.truncf %37 : vector<16x32xf32> to vector<16x32xbf16>
    %cst_37 = arith.constant dense<0.000000e+00> : vector<16x32xf32>
    %41 = tpu.matmul %36, %40, %cst_37 {dimension_numbers = #tpu.dot_dimension_numbers<[1], [0], [0], [1], [0, 0, 1, 1], [], []>} : vector<16x16xbf16>, vector<16x32xbf16>, vector<16x32xf32> -> vector<16x32xf32>
    %c0_38 = arith.constant 0 : index
    %42 = memref.load %arg1[%c0_38] : memref<10xf32, #tpu.memory_space<smem>>
    %43 = vector.broadcast %42 : f32 to vector<16x32xf32>
    %44 = arith.mulf %30, %43 : vector<16x32xf32>
    %c1_39 = arith.constant 1 : index
    %45 = memref.load %arg1[%c1_39] : memref<10xf32, #tpu.memory_space<smem>>
    %46 = vector.broadcast %45 : f32 to vector<16x32xf32>
    %47 = arith.mulf %34, %46 : vector<16x32xf32>
    %48 = arith.addf %44, %47 : vector<16x32xf32>
    %c2_40 = arith.constant 2 : index
    %49 = memref.load %arg1[%c2_40] : memref<10xf32, #tpu.memory_space<smem>>
    %50 = vector.broadcast %49 : f32 to vector<16x32xf32>
    %51 = arith.mulf %37, %50 : vector<16x32xf32>
    %52 = arith.addf %48, %51 : vector<16x32xf32>
    %c3_41 = arith.constant 3 : index
    %53 = memref.load %arg1[%c3_41] : memref<10xf32, #tpu.memory_space<smem>>
    %54 = vector.broadcast %53 : f32 to vector<16x32xf32>
    %55 = arith.mulf %39, %54 : vector<16x32xf32>
    %56 = arith.addf %52, %55 : vector<16x32xf32>
    %c4_42 = arith.constant 4 : index
    %57 = memref.load %arg1[%c4_42] : memref<10xf32, #tpu.memory_space<smem>>
    %58 = vector.broadcast %57 : f32 to vector<16x32xf32>
    %59 = arith.mulf %41, %58 : vector<16x32xf32>
    %60 = arith.addf %56, %59 : vector<16x32xf32>
    %c5 = arith.constant 5 : index
    %61 = memref.load %arg1[%c5] : memref<10xf32, #tpu.memory_space<smem>>
    %62 = vector.broadcast %61 : f32 to vector<16x32xf32>
    %63 = arith.mulf %30, %62 : vector<16x32xf32>
    %c6 = arith.constant 6 : index
    %64 = memref.load %arg1[%c6] : memref<10xf32, #tpu.memory_space<smem>>
    %65 = vector.broadcast %64 : f32 to vector<16x32xf32>
    %66 = arith.mulf %34, %65 : vector<16x32xf32>
    %67 = arith.addf %63, %66 : vector<16x32xf32>
    %c7 = arith.constant 7 : index
    %68 = memref.load %arg1[%c7] : memref<10xf32, #tpu.memory_space<smem>>
    %69 = vector.broadcast %68 : f32 to vector<16x32xf32>
    %70 = arith.mulf %37, %69 : vector<16x32xf32>
    %71 = arith.addf %67, %70 : vector<16x32xf32>
    %c8 = arith.constant 8 : index
    %72 = memref.load %arg1[%c8] : memref<10xf32, #tpu.memory_space<smem>>
    %73 = vector.broadcast %72 : f32 to vector<16x32xf32>
    %74 = arith.mulf %39, %73 : vector<16x32xf32>
    %75 = arith.addf %71, %74 : vector<16x32xf32>
    %c9 = arith.constant 9 : index
    %76 = memref.load %arg1[%c9] : memref<10xf32, #tpu.memory_space<smem>>
    %77 = vector.broadcast %76 : f32 to vector<16x32xf32>
    %78 = arith.mulf %41, %77 : vector<16x32xf32>
    %79 = arith.addf %75, %78 : vector<16x32xf32>
    %80 = tpu.concatenate %60, %79 in 0 : vector<16x32xf32>, vector<16x32xf32> -> vector<32x32xf32>
    %81 = arith.truncf %80 : vector<32x32xf32> to vector<32x32xbf16>
    %cst_43 = arith.constant dense<0.000000e+00> : vector<32x32xf32>
    %82 = tpu.matmul %81, %5, %cst_43 {dimension_numbers = #tpu.dot_dimension_numbers<[1], [0], [0], [1], [0, 0, 1, 1], [], []>} : vector<32x32xbf16>, vector<32x32xbf16>, vector<32x32xf32> -> vector<32x32xf32>
    %83 = vector.broadcast %15 : vector<1x32xf32> to vector<32x32xf32>
    %84 = arith.addf %82, %83 : vector<32x32xf32>
    %85 = math.tanh %84 : vector<32x32xf32>
    %cst_44 = arith.constant dense<0.000000e+00> : vector<16x32xf32>
    %86 = tpu.matmul %33, %7, %cst_44 {dimension_numbers = #tpu.dot_dimension_numbers<[1], [0], [0], [1], [0, 0, 1, 1], [], []>} : vector<16x32xbf16>, vector<32x32xbf16>, vector<16x32xf32> -> vector<16x32xf32>
    %87 = vector.broadcast %17 : vector<1x32xf32> to vector<16x32xf32>
    %88 = arith.addf %86, %87 : vector<16x32xf32>
    %89 = math.tanh %88 : vector<16x32xf32>
    %90 = vector.extract_strided_slice %85 {offsets = [0, 0], sizes = [16, 32], strides = [1, 1]} : vector<32x32xf32> to vector<16x32xf32>
    %91 = arith.mulf %90, %89 : vector<16x32xf32>
    %cst_45 = arith.constant dense<0.000000e+00> : vector<16xf32>
    %92 = vector.multi_reduction <add>, %91, %cst_45 [1] : vector<16x32xf32> to vector<16xf32>
    %93 = vector.shape_cast %92 : vector<16xf32> to vector<16x1xf32>
    %94 = vector.extract_strided_slice %85 {offsets = [16, 0], sizes = [16, 32], strides = [1, 1]} : vector<32x32xf32> to vector<16x32xf32>
    %95 = arith.mulf %94, %89 : vector<16x32xf32>
    %cst_46 = arith.constant dense<0.000000e+00> : vector<16xf32>
    %96 = vector.multi_reduction <add>, %95, %cst_46 [1] : vector<16x32xf32> to vector<16xf32>
    %97 = vector.shape_cast %96 : vector<16xf32> to vector<16x1xf32>
    %98 = arith.maximumf %93, %97 : vector<16x1xf32>
    %99 = arith.subf %93, %98 : vector<16x1xf32>
    %100 = math.exp %99 : vector<16x1xf32>
    %101 = arith.subf %97, %98 : vector<16x1xf32>
    %102 = math.exp %101 : vector<16x1xf32>
    %103 = arith.addf %100, %102 : vector<16x1xf32>
    %104 = tpu.reciprocal %103 {approx = true} : vector<16x1xf32> -> vector<16x1xf32>
    %105 = arith.mulf %100, %104 : vector<16x1xf32>
    %106 = vector.broadcast %105 : vector<16x1xf32> to vector<16x32xf32>
    %107 = arith.mulf %60, %106 : vector<16x32xf32>
    %108 = arith.mulf %102, %104 : vector<16x1xf32>
    %109 = vector.broadcast %108 : vector<16x1xf32> to vector<16x32xf32>
    %110 = arith.mulf %79, %109 : vector<16x32xf32>
    %111 = arith.addf %107, %110 : vector<16x32xf32>
    %112 = arith.truncf %111 : vector<16x32xf32> to vector<16x32xbf16>
    %cst_47 = arith.constant dense<0.000000e+00> : vector<16x32xf32>
    %113 = tpu.matmul %112, %9, %cst_47 {dimension_numbers = #tpu.dot_dimension_numbers<[1], [0], [0], [1], [0, 0, 1, 1], [], []>} : vector<16x32xbf16>, vector<32x32xbf16>, vector<16x32xf32> -> vector<16x32xf32>
    %114 = vector.broadcast %19 : vector<1x32xf32> to vector<16x32xf32>
    %115 = arith.addf %113, %114 : vector<16x32xf32>
    %c0_48 = arith.constant 0 : index
    %c0_49 = arith.constant 0 : index
    %c0_50 = arith.constant 0 : index
    %116 = vector.load %arg6[%c0_48, %c0_49, %c0_50] : memref<1x16x32xf32, #tpu.memory_space<vmem>>, vector<1x16x32xf32>
    %117 = vector.shape_cast %116 : vector<1x16x32xf32> to vector<16x32xf32>
    %118 = vector.shape_cast %115 : vector<16x32xf32> to vector<1x16x32xf32>
    tpu.vector_store %arg6[%c0_48, %c0_49, %c0_50], %118 {strides = array<i32>} : memref<1x16x32xf32, #tpu.memory_space<vmem>>, vector<1x16x32xf32>,
    return
  }
  func.func @transform_0(%arg0: i32) -> i32 {
    %c0_i32 = arith.constant 0 : i32
    %c0_i32_0 = arith.constant 0 : i32
    return %c0_i32 : i32
  }
  func.func @transform_1(%arg0: i32) -> (i32, i32, i32) {
    %c0_i32 = arith.constant 0 : i32
    %c0_i32_0 = arith.constant 0 : i32
    %c0_i32_1 = arith.constant 0 : i32
    return %arg0, %c0_i32, %c0_i32_0 : i32, i32, i32
  }
  func.func @transform_2(%arg0: i32) -> (i32, i32, i32) {
    %c0_i32 = arith.constant 0 : i32
    %c0_i32_0 = arith.constant 0 : i32
    %c0_i32_1 = arith.constant 0 : i32
    return %arg0, %c0_i32, %c0_i32_0 : i32, i32, i32
  }
  func.func @transform_3(%arg0: i32) -> (i32, i32, i32) {
    %c0_i32 = arith.constant 0 : i32
    %c0_i32_0 = arith.constant 0 : i32
    %c0_i32_1 = arith.constant 0 : i32
    %c0_i32_2 = arith.constant 0 : i32
    return %c0_i32, %c0_i32_0, %c0_i32_1 : i32, i32, i32
  }
  func.func @transform_4(%arg0: i32) -> (i32, i32, i32) {
    %c0_i32 = arith.constant 0 : i32
    %c0_i32_0 = arith.constant 0 : i32
    %c0_i32_1 = arith.constant 0 : i32
    %c0_i32_2 = arith.constant 0 : i32
    return %c0_i32, %c0_i32_0, %c0_i32_1 : i32, i32, i32
  }
  func.func @transform_5(%arg0: i32) -> (i32, i32, i32) {
    %c0_i32 = arith.constant 0 : i32
    %c0_i32_0 = arith.constant 0 : i32
    %c0_i32_1 = arith.constant 0 : i32
    return %arg0, %c0_i32, %c0_i32_0 : i32, i32, i32
  }
}

</mosaic_0001>

<llo_original>
// kernel: amnet_pallas.1
$region0: #{amnet_pallas.1}
  #allocation0 [shape = 'u32[]', space=smem, size = 0x4, offset = 0x4, fixed_abs, tag = 'smem constant byte address 0x4 - core index']
  #allocation1 [shape = 'u32[72,128]{1,0:T(1,128)}', space=vmem, size = 0x9000, scoped, tag = 'internal scratch']
  %s0 = inlined_call_operand.vmem [shape: f32[10], index: 0, kind: input, shape index: {}]
  %s1 = inlined_call_operand.vmem [shape: bf16[4,16,32], index: 1, kind: input, shape index: {}]
  %s2 = inlined_call_operand.vmem [shape: bf16[4,16,16], index: 2, kind: input, shape index: {}]
  %s3 = inlined_call_operand.vmem [shape: bf16[5,32,32], index: 3, kind: input, shape index: {}]
  %s4 = inlined_call_operand.vmem [shape: f32[5,1,32], index: 4, kind: input, shape index: {}]
  %s5 = inlined_call_operand.hbm [shape: f32[4,16,32], index: 5, kind: output, shape index: {}]
  %s6 = sld [smem:[#allocation0]]
  $region57: #{amnet_pallas.1} parent=0
    _
  %s8 = ssub.s32 1, %s6
  %s9 = scalar_select 0, %s8, %s6
  $region1: #{amnet_pallas.1} parent=0
    #allocation2 [shape = 'u8[512]{0}', space=smem, size = 0x200, scoped, tag = 'input window, operand 0, single buffered']
    #allocation3 [shape = 's32[2]{0}', space=sflag, size = 0x8, scoped, tag = 'scoped memory for amnet_pallas.1']
    #allocation4 [shape = 's32[2]{0}', space=sflag, size = 0x8, scoped, tag = 'scoped memory for amnet_pallas.1']
    #allocation5 [shape = 'u8[16384]{0}', space=vmem, size = 0x4000, scoped, tag = 'output window, operand 0']
    %10 = vsyncpa [#allocation4], 0
    %11 = vsyncpa [#allocation3], 0
    %s12 = scalar_lea.sflag [#allocation3], 1
    %13 = vsyncpa %s12, 0
    loop: start=0, step=1, limit=6
    $region2: #{amnet_pallas.1} parent=1 // loop_pre_header
      _
    $region3: #{amnet_pallas.1} parent=1 // loop_header
      %s15 = sphi 0, %s19
      %p16 = scmp.ge.s32.totalorder %s15, 6
      %s23 = sphi 0, %s23
      %s25 = sphi 0, %s23
      %s26 = sphi 0, %s25
      %s40 = sphi 0, %s26
      %s46 = sphi 0, %s48
      %s49 = sphi 0, %s46
      %s50 = sphi 0, %s49
      %s66 = sphi 0, %s50
      %s72 = sphi 0, %s74
      %s75 = sphi 0, %s72
      %s76 = sphi 0, %s75
      %s92 = sphi 0, %s76
      %s96 = sphi 0, %s96
      %s98 = sphi 0, %s96
      %s99 = sphi 0, %s98
      %s113 = sphi 0, %s99
      %s117 = sphi 0, %s117
      %s119 = sphi 0, %s117
      %s120 = sphi 0, %s119
      %s134 = sphi 0, %s120
      %s140 = sphi 0, %s142
      %s143 = sphi 0, %s140
      %s144 = sphi 0, %s143
      %s160 = sphi 0, %s144
    $region4: #{amnet_pallas.1} parent=1 // loop_header_branch
      %18 = sbr.rel (%p16) target = $region8
    $region5: #{amnet_pallas.1} parent=1 // loop_body
      %s20 = ssub.s32 %s15, 1
      %s21 = ssub.s32 %s15, 2
      %s22 = sadd.s32 %s15, 1
      %s24 = sadd.s32 %s23, 1
      %p27 = scmp.eq.s32.totalorder %s15, 3
      %p28 = scmp.ne.s32.totalorder %s23, %s25
      %p29 = scmp.eq.s32.totalorder %s15, 0
      %p30 = por %p28, %p29
      %p31 = scmp.ne.s32.totalorder %s23, %s25
      %p32 = scmp.eq.s32.totalorder %s20, 3
      %p33 = por %p31, %p32
      %p34 = scmp.ne.s32.totalorder %s25, %s26
      %p35 = scmp.eq.s32.totalorder %s20, 0
      %p36 = por %p34, %p35
      %p37 = scmp.ne.s32.totalorder %s25, %s26
      %p38 = scmp.eq.s32.totalorder %s21, 3
      %p39 = por %p37, %p38
      %p41 = scmp.ne.s32.totalorder %s26, %s40
      %p42 = scmp.eq.s32.totalorder %s21, 0
      %p43 = por %p41, %p42
      %s44 = ssub.s32 %s15, %s22
      %p45 = scmp.eq.s32.totalorder %s44, 0
      %s47 = sadd.s32 %s46, 1
      %s48 = scalar_select %p45, %s46, %s47
      %p51 = pneg %p45
      %p52 = scmp.eq.s32.totalorder %s15, 3
      %p53 = por %p51, %p52
      %p54 = scmp.ne.s32.totalorder %s46, %s49
      %p55 = scmp.eq.s32.totalorder %s15, 0
      %p56 = por %p54, %p55
      %p57 = scmp.ne.s32.totalorder %s46, %s49
      %p58 = scmp.eq.s32.totalorder %s20, 3
      %p59 = por %p57, %p58
      %p60 = scmp.ne.s32.totalorder %s49, %s50
      %p61 = scmp.eq.s32.totalorder %s20, 0
      %p62 = por %p60, %p61
      %p63 = scmp.ne.s32.totalorder %s49, %s50
      %p64 = scmp.eq.s32.totalorder %s21, 3
      %p65 = por %p63, %p64
      %p67 = scmp.ne.s32.totalorder %s50, %s66
      %p68 = scmp.eq.s32.totalorder %s21, 0
      %p69 = por %p67, %p68
      %s70 = ssub.s32 %s15, %s22
      %p71 = scmp.eq.s32.totalorder %s70, 0
      %s73 = sadd.s32 %s72, 1
      %s74 = scalar_select %p71, %s72, %s73
      %p77 = pneg %p71
      %p78 = scmp.eq.s32.totalorder %s15, 3
      %p79 = por %p77, %p78
      %p80 = scmp.ne.s32.totalorder %s72, %s75
      %p81 = scmp.eq.s32.totalorder %s15, 0
      %p82 = por %p80, %p81
      %p83 = scmp.ne.s32.totalorder %s72, %s75
      %p84 = scmp.eq.s32.totalorder %s20, 3
      %p85 = por %p83, %p84
      %p86 = scmp.ne.s32.totalorder %s75, %s76
      %p87 = scmp.eq.s32.totalorder %s20, 0
      %p88 = por %p86, %p87
      %p89 = scmp.ne.s32.totalorder %s75, %s76
      %p90 = scmp.eq.s32.totalorder %s21, 3
      %p91 = por %p89, %p90
      %p93 = scmp.ne.s32.totalorder %s76, %s92
      %p94 = scmp.eq.s32.totalorder %s21, 0
      %p95 = por %p93, %p94
      %s97 = sadd.s32 %s96, 1
      %p100 = scmp.eq.s32.totalorder %s15, 3
      %p101 = scmp.ne.s32.totalorder %s96, %s98
      %p102 = scmp.eq.s32.totalorder %s15, 0
      %p103 = por %p101, %p102
      %p104 = scmp.ne.s32.totalorder %s96, %s98
      %p105 = scmp.eq.s32.totalorder %s20, 3
      %p106 = por %p104, %p105
      %p107 = scmp.ne.s32.totalorder %s98, %s99
      %p108 = scmp.eq.s32.totalorder %s20, 0
      %p109 = por %p107, %p108
      %p110 = scmp.ne.s32.totalorder %s98, %s99
      %p111 = scmp.eq.s32.totalorder %s21, 3
      %p112 = por %p110, %p111
      %p114 = scmp.ne.s32.totalorder %s99, %s113
      %p115 = scmp.eq.s32.totalorder %s21, 0
      %p116 = por %p114, %p115
      %s118 = sadd.s32 %s117, 1
      %p121 = scmp.eq.s32.totalorder %s15, 3
      %p122 = scmp.ne.s32.totalorder %s117, %s119
      %p123 = scmp.eq.s32.totalorder %s15, 0
      %p124 = por %p122, %p123
      %p125 = scmp.ne.s32.totalorder %s117, %s119
      %p126 = scmp.eq.s32.totalorder %s20, 3
      %p127 = por %p125, %p126
      %p128 = scmp.ne.s32.totalorder %s119, %s120
      %p129 = scmp.eq.s32.totalorder %s20, 0
      %p130 = por %p128, %p129
      %p131 = scmp.ne.s32.totalorder %s119, %s120
      %p132 = scmp.eq.s32.totalorder %s21, 3
      %p133 = por %p131, %p132
      %p135 = scmp.ne.s32.totalorder %s120, %s134
      %p136 = scmp.eq.s32.totalorder %s21, 0
      %p137 = por %p135, %p136
      %s138 = ssub.s32 %s15, %s22
      %p139 = scmp.eq.s32.totalorder %s138, 0
      %s141 = sadd.s32 %s140, 1
      %s142 = scalar_select %p139, %s140, %s141
      %p145 = pneg %p139
      %p146 = scmp.eq.s32.totalorder %s15, 3
      %p147 = por %p145, %p146
      %p148 = scmp.ne.s32.totalorder %s140, %s143
      %p149 = scmp.eq.s32.totalorder %s15, 0
      %p150 = por %p148, %p149
      %p151 = scmp.ne.s32.totalorder %s140, %s143
      %p152 = scmp.eq.s32.totalorder %s20, 3
      %p153 = por %p151, %p152
      %p154 = scmp.ne.s32.totalorder %s143, %s144
      %p155 = scmp.eq.s32.totalorder %s20, 0
      %p156 = por %p154, %p155
      %p157 = scmp.ne.s32.totalorder %s143, %s144
      %p158 = scmp.eq.s32.totalorder %s21, 3
      %p159 = por %p157, %p158
      %p161 = scmp.ne.s32.totalorder %s144, %s160
      %p162 = scmp.eq.s32.totalorder %s21, 0
      %p163 = por %p161, %p162
      %p164 = scmp.le.s32.totalorder 1, %s15
      %p165 = scmp.lt.s32.totalorder %s15, 5
      %p166 = pnand %p164, %p165
      %p167 = pneg %p166
      // Predicated region
      $region9: #{amnet_pallas.1} parent=5 // pred_check
        _
      $region10: #{amnet_pallas.1} parent=5 // pred_check_branch
        %169 = sbr.rel (%p166) target = $region12
      $region11: #{amnet_pallas.1} parent=5 // pred_region
        %s170 = ssub.s32 %s15, 1
        // Predicated region
        $region13: #{amnet_pallas.1} parent=11 // pred_check
          %p171 = pneg %p36
        $region14: #{amnet_pallas.1} parent=11 // pred_check_branch
          %173 = sbr.rel (%p171) target = $region16
        $region15: #{amnet_pallas.1} parent=11 // pred_region
          %175 = vsyncadd [#allocation4], 0
          %s177 = sshll.u32 %s0, 4
          %s178 = int_to_ptr.vmem [resolvable:$true] %s177
          %180 = dma.vmem_to_smem %s178, 16, [#allocation2], [#allocation4]
        $region16: #{amnet_pallas.1} parent=11 // pred_fallthru
          _
        // Predicated region
        $region17: #{amnet_pallas.1} parent=11 // pred_check
          %p181 = pneg %p109
        $region18: #{amnet_pallas.1} parent=11 // pred_check_branch
          %183 = sbr.rel (%p181) target = $region20
        $region19: #{amnet_pallas.1} parent=11 // pred_region
          _
        $region20: #{amnet_pallas.1} parent=11 // pred_fallthru
          _
        // Predicated region
        $region21: #{amnet_pallas.1} parent=11 // pred_check
          %p184 = pneg %p130
        $region22: #{amnet_pallas.1} parent=11 // pred_check_branch
          %186 = sbr.rel (%p184) target = $region24
        $region23: #{amnet_pallas.1} parent=11 // pred_region
          _
        $region24: #{amnet_pallas.1} parent=11 // pred_fallthru
          _
      $region12: #{amnet_pallas.1} parent=5 // pred_fallthru
        _
      %p187 = scmp.lt.s32.totalorder %s15, 4
      // Predicated region
      $region25: #{amnet_pallas.1} parent=5 // pred_check
        %p188 = pneg %p187
      $region26: #{amnet_pallas.1} parent=5 // pred_check_branch
        %190 = sbr.rel (%p188) target = $region28
      $region27: #{amnet_pallas.1} parent=5 // pred_region
        // Predicated region
        $region29: #{amnet_pallas.1} parent=27 // pred_check
          %p191 = pneg %p56
        $region30: #{amnet_pallas.1} parent=27 // pred_check_branch
          %193 = sbr.rel (%p191) target = $region32
        $region31: #{amnet_pallas.1} parent=27 // pred_region
          %p194 = scmp.lt.s32.totalorder %s15, 3
          %s195 = scalar_select %p194, %s15, 3
          %s196 = smul.addr %s195, 2
          %s197 = smul.addr %s196, 4
          %s198 = scalar_lea.vmem %s1, %s197
        $region32: #{amnet_pallas.1} parent=27 // pred_fallthru
          _
        // Predicated region
        $region33: #{amnet_pallas.1} parent=27 // pred_check
          %p199 = pneg %p82
        $region34: #{amnet_pallas.1} parent=27 // pred_check_branch
          %201 = sbr.rel (%p199) target = $region36
        $region35: #{amnet_pallas.1} parent=27 // pred_region
          %p202 = scmp.lt.s32.totalorder %s15, 3
          %s203 = scalar_select %p202, %s15, 3
          %s204 = smul.addr %s203, 2
          %s205 = smul.addr %s204, 4
          %s206 = scalar_lea.vmem %s2, %s205
        $region36: #{amnet_pallas.1} parent=27 // pred_fallthru
          _
      $region28: #{amnet_pallas.1} parent=5 // pred_fallthru
        _
      %p207 = scmp.le.s32.totalorder 1, %s15
      %p208 = scmp.lt.s32.totalorder %s15, 5
      %p209 = pnand %p207, %p208
      %p210 = pneg %p209
      // Predicated region
      $region37: #{amnet_pallas.1} parent=5 // pred_check
        _
      $region38: #{amnet_pallas.1} parent=5 // pred_check_branch
        %212 = sbr.rel (%p209) target = $region40
      $region39: #{amnet_pallas.1} parent=5 // pred_region
        %s213 = ssub.s32 %s15, 1
        // Predicated region
        $region41: #{amnet_pallas.1} parent=39 // pred_check
          %p214 = pneg %p36
        $region42: #{amnet_pallas.1} parent=39 // pred_check_branch
          %216 = sbr.rel (%p214) target = $region44
        $region43: #{amnet_pallas.1} parent=39 // pred_region
          %218 = dma.done [#allocation4], 16
        $region44: #{amnet_pallas.1} parent=39 // pred_fallthru
          _
        %219 = sfence
        %p220 = pneg %p36
        %p221 = pneg %p33
        %p222 = scmp.lt.s32.totalorder %s20, 3
        %s223 = scalar_select %p222, %s20, 3
        %s224 = smul.addr %s223, 2
        %s225 = smul.addr %s224, 4
        %s226 = scalar_lea.vmem %s1, %s225
        %p227 = pneg %p62
        %p228 = pneg %p59
        %p229 = scmp.lt.s32.totalorder %s20, 3
        %s230 = scalar_select %p229, %s20, 3
        %s231 = smul.addr %s230, 2
        %s232 = smul.addr %s231, 4
        %s233 = scalar_lea.vmem %s2, %s232
        %p234 = pneg %p88
        %p235 = pneg %p85
        %p236 = pneg %p109
        %p237 = pneg %p106
        %p238 = pneg %p130
        %p239 = pneg %p127
        %p240 = pneg %p156
        %p241 = pneg %p153
        %s242 = sand.u32 %s143, 1
        %s243 = scalar_lea.sflag [#allocation3], %s242
        %s244 = sand.u32 %s143, 1
        %s245 = smul.addr %s244, 16
        %s246 = scalar_lea.vmem [#allocation5], %s245
        %p247 = scmp.lt.s32.totalorder %s20, 3
        %s248 = scalar_select %p247, %s20, 3
        %s249 = smul.addr %s248, 2
        %s250 = smul.addr %s249, 4
        %s251 = scalar_lea.vmem %s1, %s250
        %p252 = scmp.lt.s32.totalorder %s20, 3
        %s253 = scalar_select %p252, %s20, 3
        %s254 = smul.addr %s253, 2
        %s255 = smul.addr %s254, 4
        %s256 = scalar_lea.vmem %s2, %s255
        %v258 = vld [vmem:[%s3] sm:$0xf]
        %v259 = vld [vmem:[%s3 + $0x4] sm:$0xf]
        %v260 = vld [vmem:[%s3 + $0x8] sm:$0xf]
        %v261 = vld [vmem:[%s3 + $0xc] sm:$0xf]
        %s262 = scalar_lea.vmem %s3, 16
        %v263 = vld [vmem:[%s262] sm:$0xf]
        %v264 = vld [vmem:[%s262 + $0x4] sm:$0xf]
        %v265 = vld [vmem:[%s262 + $0x8] sm:$0xf]
        %v266 = vld [vmem:[%s262 + $0xc] sm:$0xf]
        %s267 = scalar_lea.vmem %s3, 32
        %v268 = vld [vmem:[%s267] sm:$0xf]
        %v269 = vld [vmem:[%s267 + $0x4] sm:$0xf]
        %v270 = vld [vmem:[%s267 + $0x8] sm:$0xf]
        %v271 = vld [vmem:[%s267 + $0xc] sm:$0xf]
        %s272 = scalar_lea.vmem %s3, 48
        %v273 = vld [vmem:[%s272] sm:$0xf]
        %v274 = vld [vmem:[%s272 + $0x4] sm:$0xf]
        %v275 = vld [vmem:[%s272 + $0x8] sm:$0xf]
        %v276 = vld [vmem:[%s272 + $0xc] sm:$0xf]
        %s277 = scalar_lea.vmem %s3, 64
        %v278 = vld [vmem:[%s277] sm:$0xf]
        %v279 = vld [vmem:[%s277 + $0x4] sm:$0xf]
        %v280 = vld [vmem:[%s277 + $0x8] sm:$0xf]
        %v281 = vld [vmem:[%s277 + $0xc] sm:$0xf]
        %v282 = vld [vmem:[%s4] sm:$0x1]
        %s283 = scalar_lea.vmem %s4, 1
        %v284 = vld [vmem:[%s283] sm:$0x1]
        %s285 = scalar_lea.vmem %s4, 2
        %v286 = vld [vmem:[%s285] sm:$0x1]
        %s287 = scalar_lea.vmem %s4, 3
        %v288 = vld [vmem:[%s287] sm:$0x1]
        %s289 = scalar_lea.vmem %s4, 4
        %v290 = vld [vmem:[%s289] sm:$0x1]
        %v291 = vld [vmem:[%s251] sm:$0xf]
        %v292 = vld [vmem:[%s251 + $0x4] sm:$0xf]
        %v294 = vperm.slane %v282, 0
        %v298 = vunpack.c.l.b16 %v291
        %v299 = vunpack.c.l.b16 %v292
        %v300 = vpack.c.b16 %v299, %v298
        %v305 = vunpack.c.l.b16 %v258
        %v306 = vunpack.c.l.b16 %v259
        %v307 = vunpack.c.l.b16 %v260
        %v308 = vunpack.c.l.b16 %v261
        %v309 = vpack.c.b16 %v306, %v305
        %v310 = vpack.c.b16 %v308, %v307
        %vm313 = vcmask 261120
        %v315 = vsel %vm313, %v300, 0
        %317 = vmatpush.bf16.msra.mxu0 0
        %318 = vmatpush.bf16.msra.mxu0 0
        %319 = vmatpush.bf16.msra.mxu0 0
        %320 = vmatpush.bf16.msra.mxu0 0
        %321 = vmatpush.bf16.msra.mxu0 0
        %322 = vmatpush.bf16.msra.mxu0 0
        %323 = vmatpush.bf16.msra.mxu0 %v310
        %324 = vmatpush.bf16.msra.mxu0 %v309
        %325 = vmatmul.bf16.gmra.mxu0 %v315
        %v326 = vpop.f32.mrf.mxu0
        %v327 = vadd.f32 %v294, %v326
        %v328 = vpop.f32.mrf.mxu0
        %v329 = vadd.f32 %v294, %v328
        %330 = vdwg.mxu0
        %v331 = vmax.f32 %v327, 0.0
        %v332 = vmax.f32 %v329, 0.0
        %v333 = vpack.c.bf16 %v332, %v331
        %v335 = vperm.slane %v284, 0
        %v341 = vunpack.c.l.b16 %v263
        %v342 = vunpack.c.l.b16 %v264
        %v343 = vunpack.c.l.b16 %v265
        %v344 = vunpack.c.l.b16 %v266
        %v345 = vpack.c.b16 %v342, %v341
        %v346 = vpack.c.b16 %v344, %v343
        %v350 = vsel %vm313, %v333, 0
        %352 = vmatpush.bf16.msra.mxu0 0
        %353 = vmatpush.bf16.msra.mxu0 0
        %354 = vmatpush.bf16.msra.mxu0 0
        %355 = vmatpush.bf16.msra.mxu0 0
        %356 = vmatpush.bf16.msra.mxu0 0
        %357 = vmatpush.bf16.msra.mxu0 0
        %358 = vmatpush.bf16.msra.mxu0 %v346
        %359 = vmatpush.bf16.msra.mxu0 %v345
        %360 = vmatmul.bf16.gmra.mxu0 %v350
        %v361 = vpop.f32.mrf.mxu0
        %v362 = vadd.f32 %v335, %v361
        %v363 = vpop.f32.mrf.mxu0
        %v364 = vadd.f32 %v335, %v363
        %365 = vdwg.mxu0
        %v366 = vld [vmem:[%s256] sm:$0xf]
        %v367 = vld [vmem:[%s256 + $0x4] sm:$0xf]
        %v368 = vpack.c.bf16 %v364, %v362
        %v371 = vunpack.c.l.b16 %v366
        %v372 = vunpack.c.l.b16 %v367
        %v373 = vpack.c.b16 %v372, %v371
        %vm374 = vcmask 130048
        %v376 = vsel %vm374, %v373, 0
        %378 = vmatpush.bf16.msra.mxu0 0
        %379 = vmatpush.bf16.msra.mxu0 0
        %380 = vmatpush.bf16.msra.mxu0 0
        %381 = vmatpush.bf16.msra.mxu0 0
        %382 = vmatpush.bf16.msra.mxu0 0
        %383 = vmatpush.bf16.msra.mxu0 0
        %384 = vmatpush.bf16.msra.mxu0 0
        %385 = vmatpush.bf16.msra.mxu0 %v368
        %386 = vmatmul.bf16.gmra.mxu0 %v376
        %v387 = vpop.f32.mrf.mxu0
        %v388 = vadd.f32 0.0, %v387
        %v389 = vpop.f32.mrf.mxu0
        %v390 = vadd.f32 0.0, %v389
        %391 = vdwg.mxu0
        %393 = vmatpush.bf16.msra.mxu0 0
        %394 = vmatpush.bf16.msra.mxu0 0
        %395 = vmatpush.bf16.msra.mxu0 0
        %396 = vmatpush.bf16.msra.mxu0 0
        %397 = vmatpush.bf16.msra.mxu0 0
        %398 = vmatpush.bf16.msra.mxu0 0
        %399 = vmatpush.bf16.msra.mxu0 0
        %400 = vmatpush.bf16.msra.mxu0 %v373
        %401 = vmatmul.bf16.gmra.mxu0 %v376
        %v402 = vpop.f32.mrf.mxu0
        %v403 = vadd.f32 0.0, %v402
        %v404 = vpop.f32.mrf.mxu0
        %v405 = vadd.f32 0.0, %v404
        %406 = vdwg.mxu0
        %v407 = vpack.c.bf16 %v405, %v403
        %v409 = vsel %vm374, %v407, 0
        %411 = vmatpush.bf16.msra.mxu0 0
        %412 = vmatpush.bf16.msra.mxu0 0
        %413 = vmatpush.bf16.msra.mxu0 0
        %414 = vmatpush.bf16.msra.mxu0 0
        %415 = vmatpush.bf16.msra.mxu0 0
        %416 = vmatpush.bf16.msra.mxu0 0
        %417 = vmatpush.bf16.msra.mxu0 0
        %418 = vmatpush.bf16.msra.mxu0 %v368
        %419 = vmatmul.bf16.gmra.mxu0 %v409
        %v420 = vpop.f32.mrf.mxu0
        %v421 = vadd.f32 0.0, %v420
        %v422 = vpop.f32.mrf.mxu0
        %v423 = vadd.f32 0.0, %v422
        %424 = vdwg.mxu0
        %v425 = vpack.c.bf16 %v390, %v388
        %426 = vmatpush.bf16.msra.mxu0 0
        %427 = vmatpush.bf16.msra.mxu0 0
        %428 = vmatpush.bf16.msra.mxu0 0
        %429 = vmatpush.bf16.msra.mxu0 0
        %430 = vmatpush.bf16.msra.mxu0 0
        %431 = vmatpush.bf16.msra.mxu0 0
        %432 = vmatpush.bf16.msra.mxu0 0
        %433 = vmatpush.bf16.msra.mxu0 %v425
        %434 = vmatmul.bf16.gmra.mxu0 %v409
        %v435 = vpop.f32.mrf.mxu0
        %v436 = vadd.f32 0.0, %v435
        %v437 = vpop.f32.mrf.mxu0
        %v438 = vadd.f32 0.0, %v437
        %439 = vdwg.mxu0
        %v440 = vpack.c.bf16 %v423, %v421
        %441 = vmatpush.bf16.msra.mxu0 0
        %442 = vmatpush.bf16.msra.mxu0 0
        %443 = vmatpush.bf16.msra.mxu0 0
        %444 = vmatpush.bf16.msra.mxu0 0
        %445 = vmatpush.bf16.msra.mxu0 0
        %446 = vmatpush.bf16.msra.mxu0 0
        %447 = vmatpush.bf16.msra.mxu0 0
        %448 = vmatpush.bf16.msra.mxu0 %v440
        %449 = vmatmul.bf16.gmra.mxu0 %v409
        %v450 = vpop.f32.mrf.mxu0
        %v451 = vadd.f32 0.0, %v450
        %v452 = vpop.f32.mrf.mxu0
        %v453 = vadd.f32 0.0, %v452
        %454 = vdwg.mxu0
        %s455 = sld [smem:[#allocation2]]
        %v456 = vstv %s455
        %v457 = vmul.f32 %v362, %v456
        %v458 = vmul.f32 %v364, %v456
        %s459 = sld [smem:[#allocation2 + $0x1]]
        %v460 = vstv %s459
        %v461 = vmul.f32 %v388, %v460
        %v462 = vmul.f32 %v390, %v460
        %v463 = vadd.f32 %v457, %v461
        %v464 = vadd.f32 %v458, %v462
        %s465 = sld [smem:[#allocation2 + $0x2]]
        %v466 = vstv %s465
        %v467 = vmul.f32 %v421, %v466
        %v468 = vmul.f32 %v423, %v466
        %v469 = vadd.f32 %v463, %v467
        %v470 = vadd.f32 %v464, %v468
        %s471 = sld [smem:[#allocation2 + $0x3]]
        %v472 = vstv %s471
        %v473 = vmul.f32 %v436, %v472
        %v474 = vmul.f32 %v438, %v472
        %v475 = vadd.f32 %v469, %v473
        %v476 = vadd.f32 %v470, %v474
        %s477 = sld [smem:[#allocation2 + $0x4]]
        %v478 = vstv %s477
        %v479 = vmul.f32 %v451, %v478
        %v480 = vmul.f32 %v453, %v478
        %v481 = vadd.f32 %v475, %v479
        %v482 = vadd.f32 %v476, %v480
        %s483 = sld [smem:[#allocation2 + $0x5]]
        %v484 = vstv %s483
        %v485 = vmul.f32 %v362, %v484
        %v486 = vmul.f32 %v364, %v484
        %s487 = sld [smem:[#allocation2 + $0x6]]
        %v488 = vstv %s487
        %v489 = vmul.f32 %v388, %v488
        %v490 = vmul.f32 %v390, %v488
        %v491 = vadd.f32 %v485, %v489
        %v492 = vadd.f32 %v486, %v490
        %s493 = sld [smem:[#allocation2 + $0x7]]
        %v494 = vstv %s493
        %v495 = vmul.f32 %v421, %v494
        %v496 = vmul.f32 %v423, %v494
        %v497 = vadd.f32 %v491, %v495
        %v498 = vadd.f32 %v492, %v496
        %s499 = sld [smem:[#allocation2 + $0x8]]
        %v500 = vstv %s499
        %v501 = vmul.f32 %v436, %v500
        %v502 = vmul.f32 %v438, %v500
        %v503 = vadd.f32 %v497, %v501
        %v504 = vadd.f32 %v498, %v502
        %s505 = sld [smem:[#allocation2 + $0x9]]
        %v506 = vstv %s505
        %v507 = vmul.f32 %v451, %v506
        %v508 = vmul.f32 %v453, %v506
        %v509 = vadd.f32 %v503, %v507
        %v510 = vadd.f32 %v504, %v508
        %v511 = vpack.c.bf16 %v482, %v481
        %v512 = vpack.c.bf16 %v510, %v509
        %v514 = vperm.slane %v286, 0
        %v520 = vunpack.c.l.b16 %v268
        %v521 = vunpack.c.l.b16 %v269
        %v522 = vunpack.c.l.b16 %v270
        %v523 = vunpack.c.l.b16 %v271
        %v524 = vpack.c.b16 %v521, %v520
        %v525 = vpack.c.b16 %v523, %v522
        %v529 = vsel %vm313, %v511, 0
        %v532 = vsel %vm313, %v512, 0
        %534 = vmatpush.bf16.msra.mxu0 0
        %535 = vmatpush.bf16.msra.mxu0 0
        %536 = vmatpush.bf16.msra.mxu0 0
        %537 = vmatpush.bf16.msra.mxu0 0
        %538 = vmatpush.bf16.msra.mxu0 0
        %539 = vmatpush.bf16.msra.mxu0 0
        %540 = vmatpush.bf16.msra.mxu0 %v525
        %541 = vmatpush.bf16.msra.mxu0 %v524
        %542 = vmatmul.bf16.gmra.mxu0 %v529
        %v543 = vpop.f32.mrf.mxu0
        %v544 = vadd.f32 %v514, %v543
        %v545 = vpop.f32.mrf.mxu0
        %v546 = vadd.f32 %v514, %v545
        %547 = vmatmul.bf16.gmra.mxu0 %v532
        %v548 = vpop.f32.mrf.mxu0
        %v549 = vadd.f32 %v514, %v548
        %v550 = vpop.f32.mrf.mxu0
        %v551 = vadd.f32 %v514, %v550
        %552 = vdwg.mxu0
        %v553 = vtanh.pop %v544
        %v554 = vtanh.pop %v546
        %v555 = vtanh.pop %v549
        %v556 = vtanh.pop %v551
        %v558 = vperm.slane %v288, 0
        %v564 = vunpack.c.l.b16 %v273
        %v565 = vunpack.c.l.b16 %v274
        %v566 = vunpack.c.l.b16 %v275
        %v567 = vunpack.c.l.b16 %v276
        %v568 = vpack.c.b16 %v565, %v564
        %v569 = vpack.c.b16 %v567, %v566
        %v573 = vsel %vm313, %v368, 0
        %575 = vmatpush.bf16.msra.mxu0 0
        %576 = vmatpush.bf16.msra.mxu0 0
        %577 = vmatpush.bf16.msra.mxu0 0
        %578 = vmatpush.bf16.msra.mxu0 0
        %579 = vmatpush.bf16.msra.mxu0 0
        %580 = vmatpush.bf16.msra.mxu0 0
        %581 = vmatpush.bf16.msra.mxu0 %v569
        %582 = vmatpush.bf16.msra.mxu0 %v568
        %583 = vmatmul.bf16.gmra.mxu0 %v573
        %v584 = vpop.f32.mrf.mxu0
        %v585 = vadd.f32 %v558, %v584
        %v586 = vpop.f32.mrf.mxu0
        %v587 = vadd.f32 %v558, %v586
        %588 = vdwg.mxu0
        %v589 = vtanh.pop %v585
        %v590 = vtanh.pop %v587
        %v591 = vmul.f32 %v553, %v589
        %v592 = vmul.f32 %v554, %v590
        %v593 = vsel %vm313, %v591, 0.0
        %594 = vadd.xlane.f32.xlu0 %v593
        %v595 = vpop.xlane.xlu0 %594
        %v596 = vsel %vm313, %v592, 0.0
        %597 = vadd.xlane.f32.xlu0 %v596
        %v598 = vpop.xlane.xlu0 %597
        %v599 = vmul.f32 %v555, %v589
        %v600 = vmul.f32 %v556, %v590
        %v601 = vsel %vm313, %v599, 0.0
        %602 = vadd.xlane.f32.xlu0 %v601
        %v603 = vpop.xlane.xlu0 %602
        %v604 = vsel %vm313, %v600, 0.0
        %605 = vadd.xlane.f32.xlu0 %v604
        %v606 = vpop.xlane.xlu0 %605
        %v607 = vmax.f32 %v595, %v603
        %v608 = vmax.f32 %v598, %v606
        %v609 = vsub.f32 %v595, %v607
        %v610 = vsub.f32 %v598, %v608
        %v611 = vmul.f32 %v609, 1.442695
        %v612 = vpow.pop %v611
        %v613 = vmul.f32 %v610, 1.442695
        %v614 = vpow.pop %v613
        %v615 = vsub.f32 %v603, %v607
        %v616 = vsub.f32 %v606, %v608
        %v617 = vmul.f32 %v615, 1.442695
        %v618 = vpow.pop %v617
        %v619 = vmul.f32 %v616, 1.442695
        %v620 = vpow.pop %v619
        %v621 = vadd.f32 %v612, %v618
        %v622 = vadd.f32 %v614, %v620
        %v623 = vrcp.pop %v621
        %v624 = vrcp.pop %v622
        %v625 = vmul.f32 %v612, %v623
        %v626 = vmul.f32 %v614, %v624
        %v627 = vmul.f32 %v481, %v625
        %v628 = vmul.f32 %v482, %v626
        %v629 = vmul.f32 %v618, %v623
        %v630 = vmul.f32 %v620, %v624
        %v631 = vmul.f32 %v509, %v629
        %v632 = vmul.f32 %v510, %v630
        %v633 = vadd.f32 %v627, %v631
        %v634 = vadd.f32 %v628, %v632
        %v635 = vpack.c.bf16 %v634, %v633
        %v637 = vperm.slane %v290, 0
        %v643 = vunpack.c.l.b16 %v278
        %v644 = vunpack.c.l.b16 %v279
        %v645 = vunpack.c.l.b16 %v280
        %v646 = vunpack.c.l.b16 %v281
        %v647 = vpack.c.b16 %v644, %v643
        %v648 = vpack.c.b16 %v646, %v645
        %v652 = vsel %vm313, %v635, 0
        %654 = vmatpush.bf16.msra.mxu0 0
        %655 = vmatpush.bf16.msra.mxu0 0
        %656 = vmatpush.bf16.msra.mxu0 0
        %657 = vmatpush.bf16.msra.mxu0 0
        %658 = vmatpush.bf16.msra.mxu0 0
        %659 = vmatpush.bf16.msra.mxu0 0
        %660 = vmatpush.bf16.msra.mxu0 %v648
        %661 = vmatpush.bf16.msra.mxu0 %v647
        %662 = vmatmul.bf16.gmra.mxu0 %v652
        %v663 = vpop.f32.mrf.mxu0
        %v664 = vadd.f32 %v637, %v663
        %v665 = vpop.f32.mrf.mxu0
        %v666 = vadd.f32 %v637, %v665
        %667 = vdwg.mxu0
        %668 = vst.msk [vmem:[%s246] sm:$0xff] %vm313, %v664
        %669 = vst.msk [vmem:[%s246 + $0x8] sm:$0xff] %vm313, %v666
        %s670 = sand.u32 %s143, 1
        %s671 = scalar_lea.sflag [#allocation3], %s670
        %s672 = sand.u32 %s143, 1
        %s673 = smul.addr %s672, 16
        %s674 = scalar_lea.vmem [#allocation5], %s673
        // Predicated region
        $region45: #{amnet_pallas.1} parent=39 // pred_check
          %p675 = pneg %p153
        $region46: #{amnet_pallas.1} parent=39 // pred_check_branch
          %677 = sbr.rel (%p675) target = $region48
        $region47: #{amnet_pallas.1} parent=39 // pred_region
          %679 = vsyncadd %s671, 0
          %s680 = smul.addr %s20, 2
          %s681 = smul.addr %s680, 8
          %s682 = scalar_lea.hbm %s5, %s681
          %s683 = sshll.u32 %s674, 4
          %s684 = int_to_ptr.vmem [resolvable:$true] %s683
          %s685 = sshll.u32 %s682, 4
          %s686 = int_to_ptr.hbm [resolvable:$true] %s685
          %691 = dma.vmem_to_hbm [thread:$0]  %s684, 256, %s686, %s671, 128, 128, 8
        $region48: #{amnet_pallas.1} parent=39 // pred_fallthru
          _
      $region40: #{amnet_pallas.1} parent=5 // pred_fallthru
        _
      %p692 = scmp.le.s32.totalorder 2, %s15
      // Predicated region
      $region49: #{amnet_pallas.1} parent=5 // pred_check
        %p693 = pneg %p692
      $region50: #{amnet_pallas.1} parent=5 // pred_check_branch
        %695 = sbr.rel (%p693) target = $region52
      $region51: #{amnet_pallas.1} parent=5 // pred_region
        %s696 = ssub.s32 %s15, 2
        // Predicated region
        $region53: #{amnet_pallas.1} parent=51 // pred_check
          %p697 = pneg %p159
        $region54: #{amnet_pallas.1} parent=51 // pred_check_branch
          %699 = sbr.rel (%p697) target = $region56
        $region55: #{amnet_pallas.1} parent=51 // pred_region
          %s700 = sand.u32 %s144, 1
          %s701 = scalar_lea.sflag [#allocation3], %s700
          %s702 = sand.u32 %s144, 1
          %s703 = smul.addr %s702, 16
          %s704 = scalar_lea.vmem [#allocation5], %s703
          %706 = dma.done %s701, 256
        $region56: #{amnet_pallas.1} parent=51 // pred_fallthru
          _
      $region52: #{amnet_pallas.1} parent=5 // pred_fallthru
        _
    $region6: #{amnet_pallas.1} parent=1 // loop_footer
      %s19 = sadd.s32 1, %s15
    $region7: #{amnet_pallas.1} parent=1 // loop_footer_branch
      %14 = sbr.rel target = $region3
    $region8: #{amnet_pallas.1} parent=1 // loop_exit
      _
    %707 = vsyncpa [#allocation3], 1
    %s708 = scalar_lea.sflag [#allocation3], 1
    %709 = vsyncpa %s708, 1
    %710 = vsyncpa [#allocation4], 1
    %s711 = scalar_lea.sflag [#allocation4], 1
    %712 = vsyncpa %s711, 1

</llo_original>
